<compile_context>
chip_gen: v7x
topology: tpu7x:2x2x1
jax: 0.10.0
libtpu: 0.0.40
codegen_flags: <defaults>
</compile_context>

<pallas_src>
import functools

import jax
import jax.numpy as jnp
from jax.experimental import pallas as pl
from jax.experimental.pallas import tpu as pltpu


def _groupnorm_kernel(x_ref, w_ref, b_ref, o_ref, *, eps, inv_n):
    # x_ref: (1, G, L)  one batch element, all groups; L = Cg*H*W (lane-dense)
    # w_ref: (1, G, L)  per-channel scale, pre-broadcast to the lane layout (resident)
    # b_ref: (1, G, L)  per-channel shift, same layout (resident)
    x = x_ref[0].astype(jnp.float32)                  # (G, L)

    # One pass over x for both moments (biased variance, like F.group_norm),
    # accumulated in f32.
    s1 = jnp.sum(x, axis=-1, keepdims=True)           # (G, 1)
    s2 = jnp.sum(x * x, axis=-1, keepdims=True)       # (G, 1)
    mean = s1 * inv_n
    var = s2 * inv_n - mean * mean
    inv = jax.lax.rsqrt(var + eps)                    # (G, 1)

    # Normalize + per-channel affine: 4 full-width VPU ops (mul, sub, mul, add).
    xn = x * inv - mean * inv                         # (G, L)
    w = w_ref[0].astype(jnp.float32)
    b = b_ref[0].astype(jnp.float32)
    o_ref[0] = (xn * w + b).astype(o_ref.dtype)


def group_norm_2d(x, weight, bias, *, num_groups=32, eps=1e-6):
    """GroupNorm over NCHW input using a Pallas TPU kernel."""
    B, C, H, W = x.shape
    G = num_groups
    assert C % G == 0, "dim must be divisible by num_groups"
    Cg = C // G
    L = Cg * H * W  # lane-dense last dim (multiple of 128 for typical UNet shapes)

    # Free (contiguous) reshape: groups -> sublanes, Cg*H*W -> lanes.
    x3 = x.reshape(B, G, L)

    # Pre-broadcast the per-channel affine params into the same lane-dense
    # layout; they sit resident in VMEM for the whole grid (constant index_map).
    w3 = jnp.broadcast_to(weight.astype(x.dtype).reshape(G, Cg, 1),
                          (G, Cg, H * W)).reshape(1, G, L)
    b3 = jnp.broadcast_to(bias.astype(x.dtype).reshape(G, Cg, 1),
                          (G, Cg, H * W)).reshape(1, G, L)

    kernel = functools.partial(_groupnorm_kernel, eps=float(eps),
                               inv_n=1.0 / float(L))

    # VMEM budget: in/out double-buffered + resident w/b + f32 temps + margin.
    itemsize = jnp.dtype(x.dtype).itemsize
    blk_bytes = G * L * itemsize
    est = 6 * blk_bytes + 6 * G * L * 4 + (1 << 20)
    vmem_limit = int(min(max(est, 32 << 20), 64 << 20))
    # NOTE: one (1, G, L) slab per grid step must fit this budget.  For very
    # large UNet levels (e.g. C=256, H=W=128, f32 -> 16 MiB slabs) on v7x's
    # 64 MiB VMEM, split H*W into a second ("arbitrary") grid axis and
    # accumulate the group moments across spatial chunks before normalizing.

    out = pl.pallas_call(
        kernel,
        out_shape=jax.ShapeDtypeStruct((B, G, L), x.dtype),
        grid=(B,),
        in_specs=[
            pl.BlockSpec((1, G, L), lambda b: (b, 0, 0)),
            pl.BlockSpec((1, G, L), lambda b: (0, 0, 0)),  # grid-resident weight
            pl.BlockSpec((1, G, L), lambda b: (0, 0, 0)),  # grid-resident bias
        ],
        out_specs=pl.BlockSpec((1, G, L), lambda b: (b, 0, 0)),
        compiler_params=pltpu.CompilerParams(
            dimension_semantics=("parallel",),
            vmem_limit_bytes=vmem_limit),
    )(x3, w3, b3)

    return out.reshape(B, C, H, W)


def _ref_group_norm(x, weight, bias, num_groups, eps):
    B, C, H, W = x.shape
    xg = x.astype(jnp.float32).reshape(B, num_groups, -1)
    mean = xg.mean(-1, keepdims=True)
    var = jnp.square(xg - mean).mean(-1, keepdims=True)
    xn = ((xg - mean) / jnp.sqrt(var + eps)).reshape(B, C, H, W)
    out = xn * weight[None, :, None, None] + bias[None, :, None, None]
    return out.astype(x.dtype)


if __name__ == "__main__":
    # Module config: dim=64, num_groups=32 (default), eps=1e-6.
    dim, num_groups, eps = 64, 32, 1e-6
    B, H, W = 2, 8, 8

    key = jax.random.PRNGKey(0)
    kx, kw, kb = jax.random.split(key, 3)
    x = jax.random.normal(kx, (B, dim, H, W), dtype=jnp.float32)

    # Deterministic, non-trivial affine params (module init is ones/zeros;
    # random values exercise the per-channel weight/bias path as well).
    weight = 1.0 + 0.1 * jax.random.normal(kw, (dim,), dtype=jnp.float32)
    bias = 0.1 * jax.random.normal(kb, (dim,), dtype=jnp.float32)

    out = group_norm_2d(x, weight, bias, num_groups=num_groups, eps=eps)
    out = jax.block_until_ready(out)

    ref = _ref_group_norm(x, weight, bias, num_groups, eps)
    assert out.shape == x.shape and out.dtype == x.dtype
    assert jnp.allclose(out, ref, atol=1e-4, rtol=1e-4), "mismatch vs reference"

    print("KERNEL_OK")
</pallas_src>

<mosaic_0001>
module attributes {stable_mosaic.version = 11 : i64} {
  func.func @_groupnorm_kernel(%arg0: i32, %arg1: memref<1x32x128xf32, #tpu.memory_space<vmem>>, %arg2: memref<1x32x128xf32, #tpu.memory_space<vmem>>, %arg3: memref<1x32x128xf32, #tpu.memory_space<vmem>>, %arg4: memref<1x32x128xf32, #tpu.memory_space<vmem>>) attributes {dimension_semantics = [#tpu.dimension_semantics<parallel>], iteration_bounds = array<i64: 2>, scalar_prefetch = 0 : i64, scratch_operands = 0 : i64, tpu.core_type = #tpu.core_type<tc>, window_params = [{transform_indices = @transform_0, window_bounds = array<i64: 1, 32, 128>}, {pipeline_mode = #tpu.pipeline_mode<synchronous>, transform_indices = @transform_1, window_bounds = array<i64: 1, 32, 128>}, {pipeline_mode = #tpu.pipeline_mode<synchronous>, transform_indices = @transform_2, window_bounds = array<i64: 1, 32, 128>}, {transform_indices = @transform_3, window_bounds = array<i64: 1, 32, 128>}]} {
    %c0 = arith.constant 0 : index
    %c0_0 = arith.constant 0 : index
    %c0_1 = arith.constant 0 : index
    %0 = vector.load %arg1[%c0, %c0_0, %c0_1] : memref<1x32x128xf32, #tpu.memory_space<vmem>>, vector<1x32x128xf32>
    %1 = vector.shape_cast %0 : vector<1x32x128xf32> to vector<32x128xf32>
    %cst = arith.constant dense<0.000000e+00> : vector<32xf32>
    %2 = vector.multi_reduction <add>, %1, %cst [1] : vector<32x128xf32> to vector<32xf32>
    %3 = vector.shape_cast %2 : vector<32xf32> to vector<32x1xf32>
    %4 = arith.mulf %1, %1 : vector<32x128xf32>
    %cst_2 = arith.constant dense<0.000000e+00> : vector<32xf32>
    %5 = vector.multi_reduction <add>, %4, %cst_2 [1] : vector<32x128xf32> to vector<32xf32>
    %6 = vector.shape_cast %5 : vector<32xf32> to vector<32x1xf32>
    %cst_3 = arith.constant 7.812500e-03 : f32
    %7 = vector.broadcast %cst_3 : f32 to vector<32x1xf32>
    %8 = arith.mulf %3, %7 : vector<32x1xf32>
    %cst_4 = arith.constant 7.812500e-03 : f32
    %9 = vector.broadcast %cst_4 : f32 to vector<32x1xf32>
    %10 = arith.mulf %6, %9 : vector<32x1xf32>
    %11 = arith.mulf %8, %8 : vector<32x1xf32>
    %12 = arith.subf %10, %11 : vector<32x1xf32>
    %cst_5 = arith.constant 9.99999997E-7 : f32
    %13 = vector.broadcast %cst_5 : f32 to vector<32x1xf32>
    %14 = arith.addf %12, %13 : vector<32x1xf32>
    %15 = math.rsqrt %14 : vector<32x1xf32>
    %16 = vector.broadcast %15 : vector<32x1xf32> to vector<32x128xf32>
    %17 = arith.mulf %1, %16 : vector<32x128xf32>
    %18 = arith.mulf %8, %15 : vector<32x1xf32>
    %19 = vector.broadcast %18 : vector<32x1xf32> to vector<32x128xf32>
    %20 = arith.subf %17, %19 : vector<32x128xf32>
    %c0_6 = arith.constant 0 : index
    %c0_7 = arith.constant 0 : index
    %c0_8 = arith.constant 0 : index
    %21 = vector.load %arg2[%c0_6, %c0_7, %c0_8] : memref<1x32x128xf32, #tpu.memory_space<vmem>>, vector<1x32x128xf32>
    %22 = vector.shape_cast %21 : vector<1x32x128xf32> to vector<32x128xf32>
    %c0_9 = arith.constant 0 : index
    %c0_10 = arith.constant 0 : index
    %c0_11 = arith.constant 0 : index
    %23 = vector.load %arg3[%c0_9, %c0_10, %c0_11] : memref<1x32x128xf32, #tpu.memory_space<vmem>>, vector<1x32x128xf32>
    %24 = vector.shape_cast %23 : vector<1x32x128xf32> to vector<32x128xf32>
    %25 = arith.mulf %20, %22 : vector<32x128xf32>
    %26 = arith.addf %25, %24 : vector<32x128xf32>
    %c0_12 = arith.constant 0 : index
    %c0_13 = arith.constant 0 : index
    %c0_14 = arith.constant 0 : index
    %27 = vector.load %arg4[%c0_12, %c0_13, %c0_14] : memref<1x32x128xf32, #tpu.memory_space<vmem>>, vector<1x32x128xf32>
    %28 = vector.shape_cast %27 : vector<1x32x128xf32> to vector<32x128xf32>
    %29 = vector.shape_cast %26 : vector<32x128xf32> to vector<1x32x128xf32>
    tpu.vector_store %arg4[%c0_12, %c0_13, %c0_14], %29 {strides = array<i32>} : memref<1x32x128xf32, #tpu.memory_space<vmem>>, vector<1x32x128xf32>,
    return
  }
  func.func @transform_0(%arg0: i32) -> (i32, i32, i32) {
    %c0_i32 = arith.constant 0 : i32
    %c0_i32_0 = arith.constant 0 : i32
    %c0_i32_1 = arith.constant 0 : i32
    return %arg0, %c0_i32, %c0_i32_0 : i32, i32, i32
  }
  func.func @transform_1(%arg0: i32) -> (i32, i32, i32) {
    %c0_i32 = arith.constant 0 : i32
    %c0_i32_0 = arith.constant 0 : i32
    %c0_i32_1 = arith.constant 0 : i32
    %c0_i32_2 = arith.constant 0 : i32
    return %c0_i32, %c0_i32_0, %c0_i32_1 : i32, i32, i32
  }
  func.func @transform_2(%arg0: i32) -> (i32, i32, i32) {
    %c0_i32 = arith.constant 0 : i32
    %c0_i32_0 = arith.constant 0 : i32
    %c0_i32_1 = arith.constant 0 : i32
    %c0_i32_2 = arith.constant 0 : i32
    return %c0_i32, %c0_i32_0, %c0_i32_1 : i32, i32, i32
  }
  func.func @transform_3(%arg0: i32) -> (i32, i32, i32) {
    %c0_i32 = arith.constant 0 : i32
    %c0_i32_0 = arith.constant 0 : i32
    %c0_i32_1 = arith.constant 0 : i32
    return %arg0, %c0_i32, %c0_i32_0 : i32, i32, i32
  }
}

</mosaic_0001>

<llo_original>
// kernel: tpu_custom_call.1
$region0: #{tpu_custom_call.1}
  #allocation0 [shape = 'u32[]', space=smem, size = 0x4, offset = 0x4, fixed_abs, tag = 'smem constant byte address 0x4 - core index']
  #allocation1 [shape = 'u32[144,128]{1,0:T(1,128)}', space=vmem, size = 0x12000, scoped, tag = 'internal scratch']
  %s0 = inlined_call_operand.hbm [shape: f32[2,32,128], index: 0, kind: input, shape index: {}]
  %s1 = inlined_call_operand.hbm [shape: f32[1,32,128], index: 1, kind: input, shape index: {}]
  %s2 = inlined_call_operand.hbm [shape: f32[1,32,128], index: 2, kind: input, shape index: {}]
  %s3 = inlined_call_operand.hbm [shape: f32[2,32,128], index: 3, kind: output, shape index: {}]
  %s4 = sld [smem:[#allocation0]]
  $region57: #{tpu_custom_call.1} parent=0
    _
  %s6 = ssub.s32 1, %s4
  %s7 = scalar_select 0, %s6, %s4
  $region1: #{tpu_custom_call.1} parent=0
    #allocation2 [shape = 'u8[32768]{0}', space=vmem, size = 0x8000, scoped, tag = 'input window, operand 0']
    #allocation3 [shape = 's32[2]{0}', space=sflag, size = 0x8, scoped, tag = 'scoped memory for tpu_custom_call.1']
    #allocation4 [shape = 's32[2]{0}', space=sflag, size = 0x8, scoped, tag = 'scoped memory for tpu_custom_call.1']
    #allocation5 [shape = 'u8[16384]{0}', space=vmem, size = 0x4000, scoped, tag = 'input window, operand 1, single buffered']
    #allocation6 [shape = 's32[1]{0}', space=sflag, size = 0x4, scoped, tag = 'scoped memory for tpu_custom_call.1']
    #allocation7 [shape = 'u8[16384]{0}', space=vmem, size = 0x4000, scoped, tag = 'input window, operand 2, single buffered']
    #allocation8 [shape = 'u8[32768]{0}', space=vmem, size = 0x8000, scoped, tag = 'output window, operand 0']
    %8 = vsyncpa [#allocation3], 0
    %s9 = scalar_lea.sflag [#allocation3], 1
    %10 = vsyncpa %s9, 0
    %11 = vsyncpa [#allocation6], 0
    %12 = vsyncpa [#allocation4], 0
    %s13 = scalar_lea.sflag [#allocation4], 1
    %14 = vsyncpa %s13, 0
    loop: start=0, step=1, limit=4
    $region2: #{tpu_custom_call.1} parent=1 // loop_pre_header
      _
    $region3: #{tpu_custom_call.1} parent=1 // loop_header
      %s16 = sphi 0, %s20
      %p17 = scmp.ge.s32.totalorder %s16, 4
      %s26 = sphi 0, %s28
      %s29 = sphi 0, %s26
      %s30 = sphi 0, %s29
      %s46 = sphi 0, %s30
      %s50 = sphi 0, %s50
      %s52 = sphi 0, %s50
      %s53 = sphi 0, %s52
      %s67 = sphi 0, %s53
      %s71 = sphi 0, %s71
      %s73 = sphi 0, %s71
      %s74 = sphi 0, %s73
      %s88 = sphi 0, %s74
      %s94 = sphi 0, %s96
      %s97 = sphi 0, %s94
      %s98 = sphi 0, %s97
      %s114 = sphi 0, %s98
    $region4: #{tpu_custom_call.1} parent=1 // loop_header_branch
      %19 = sbr.rel (%p17) target = $region8
    $region5: #{tpu_custom_call.1} parent=1 // loop_body
      %s21 = ssub.s32 %s16, 1
      %s22 = ssub.s32 %s16, 2
      %s23 = sadd.s32 %s16, 1
      %s24 = ssub.s32 %s16, %s23
      %p25 = scmp.eq.s32.totalorder %s24, 0
      %s27 = sadd.s32 %s26, 1
      %s28 = scalar_select %p25, %s26, %s27
      %p31 = pneg %p25
      %p32 = scmp.eq.s32.totalorder %s16, 1
      %p33 = por %p31, %p32
      %p34 = scmp.ne.s32.totalorder %s26, %s29
      %p35 = scmp.eq.s32.totalorder %s16, 0
      %p36 = por %p34, %p35
      %p37 = scmp.ne.s32.totalorder %s26, %s29
      %p38 = scmp.eq.s32.totalorder %s21, 1
      %p39 = por %p37, %p38
      %p40 = scmp.ne.s32.totalorder %s29, %s30
      %p41 = scmp.eq.s32.totalorder %s21, 0
      %p42 = por %p40, %p41
      %p43 = scmp.ne.s32.totalorder %s29, %s30
      %p44 = scmp.eq.s32.totalorder %s22, 1
      %p45 = por %p43, %p44
      %p47 = scmp.ne.s32.totalorder %s30, %s46
      %p48 = scmp.eq.s32.totalorder %s22, 0
      %p49 = por %p47, %p48
      %s51 = sadd.s32 %s50, 1
      %p54 = scmp.eq.s32.totalorder %s16, 1
      %p55 = scmp.ne.s32.totalorder %s50, %s52
      %p56 = scmp.eq.s32.totalorder %s16, 0
      %p57 = por %p55, %p56
      %p58 = scmp.ne.s32.totalorder %s50, %s52
      %p59 = scmp.eq.s32.totalorder %s21, 1
      %p60 = por %p58, %p59
      %p61 = scmp.ne.s32.totalorder %s52, %s53
      %p62 = scmp.eq.s32.totalorder %s21, 0
      %p63 = por %p61, %p62
      %p64 = scmp.ne.s32.totalorder %s52, %s53
      %p65 = scmp.eq.s32.totalorder %s22, 1
      %p66 = por %p64, %p65
      %p68 = scmp.ne.s32.totalorder %s53, %s67
      %p69 = scmp.eq.s32.totalorder %s22, 0
      %p70 = por %p68, %p69
      %s72 = sadd.s32 %s71, 1
      %p75 = scmp.eq.s32.totalorder %s16, 1
      %p76 = scmp.ne.s32.totalorder %s71, %s73
      %p77 = scmp.eq.s32.totalorder %s16, 0
      %p78 = por %p76, %p77
      %p79 = scmp.ne.s32.totalorder %s71, %s73
      %p80 = scmp.eq.s32.totalorder %s21, 1
      %p81 = por %p79, %p80
      %p82 = scmp.ne.s32.totalorder %s73, %s74
      %p83 = scmp.eq.s32.totalorder %s21, 0
      %p84 = por %p82, %p83
      %p85 = scmp.ne.s32.totalorder %s73, %s74
      %p86 = scmp.eq.s32.totalorder %s22, 1
      %p87 = por %p85, %p86
      %p89 = scmp.ne.s32.totalorder %s74, %s88
      %p90 = scmp.eq.s32.totalorder %s22, 0
      %p91 = por %p89, %p90
      %s92 = ssub.s32 %s16, %s23
      %p93 = scmp.eq.s32.totalorder %s92, 0
      %s95 = sadd.s32 %s94, 1
      %s96 = scalar_select %p93, %s94, %s95
      %p99 = pneg %p93
      %p100 = scmp.eq.s32.totalorder %s16, 1
      %p101 = por %p99, %p100
      %p102 = scmp.ne.s32.totalorder %s94, %s97
      %p103 = scmp.eq.s32.totalorder %s16, 0
      %p104 = por %p102, %p103
      %p105 = scmp.ne.s32.totalorder %s94, %s97
      %p106 = scmp.eq.s32.totalorder %s21, 1
      %p107 = por %p105, %p106
      %p108 = scmp.ne.s32.totalorder %s97, %s98
      %p109 = scmp.eq.s32.totalorder %s21, 0
      %p110 = por %p108, %p109
      %p111 = scmp.ne.s32.totalorder %s97, %s98
      %p112 = scmp.eq.s32.totalorder %s22, 1
      %p113 = por %p111, %p112
      %p115 = scmp.ne.s32.totalorder %s98, %s114
      %p116 = scmp.eq.s32.totalorder %s22, 0
      %p117 = por %p115, %p116
      %p118 = scmp.le.s32.totalorder 1, %s16
      %p119 = scmp.lt.s32.totalorder %s16, 3
      %p120 = pnand %p118, %p119
      %p121 = pneg %p120
      // Predicated region
      $region9: #{tpu_custom_call.1} parent=5 // pred_check
        _
      $region10: #{tpu_custom_call.1} parent=5 // pred_check_branch
        %123 = sbr.rel (%p120) target = $region12
      $region11: #{tpu_custom_call.1} parent=5 // pred_region
        %s124 = ssub.s32 %s16, 1
        // Predicated region
        $region13: #{tpu_custom_call.1} parent=11 // pred_check
          %p125 = pneg %p63
        $region14: #{tpu_custom_call.1} parent=11 // pred_check_branch
          %127 = sbr.rel (%p125) target = $region16
        $region15: #{tpu_custom_call.1} parent=11 // pred_region
          %s129 = ssub.s32 512, 512
          %130 = vsyncadd [#allocation6], %s129
          %s131 = sshll.u32 [#allocation5], 4
          %s132 = int_to_ptr.vmem [resolvable:$true] %s131
          %137 = dma.hbm_to_vmem [thread:$0]  %s1, 512, %s132, [#allocation6], 128, 128, 8
        $region16: #{tpu_custom_call.1} parent=11 // pred_fallthru
          _
        // Predicated region
        $region17: #{tpu_custom_call.1} parent=11 // pred_check
          %p138 = pneg %p84
        $region18: #{tpu_custom_call.1} parent=11 // pred_check_branch
          %140 = sbr.rel (%p138) target = $region20
        $region19: #{tpu_custom_call.1} parent=11 // pred_region
          %s142 = ssub.s32 512, 512
          %143 = vsyncadd [#allocation6], %s142
          %s144 = sshll.u32 [#allocation7], 4
          %s145 = int_to_ptr.vmem [resolvable:$true] %s144
          %150 = dma.hbm_to_vmem [thread:$0]  %s2, 512, %s145, [#allocation6], 128, 128, 8
        $region20: #{tpu_custom_call.1} parent=11 // pred_fallthru
          _
      $region12: #{tpu_custom_call.1} parent=5 // pred_fallthru
        _
      %p151 = scmp.lt.s32.totalorder %s16, 2
      // Predicated region
      $region21: #{tpu_custom_call.1} parent=5 // pred_check
        %p152 = pneg %p151
      $region22: #{tpu_custom_call.1} parent=5 // pred_check_branch
        %154 = sbr.rel (%p152) target = $region24
      $region23: #{tpu_custom_call.1} parent=5 // pred_region
        // Predicated region
        $region25: #{tpu_custom_call.1} parent=23 // pred_check
          %p155 = pneg %p36
        $region26: #{tpu_custom_call.1} parent=23 // pred_check_branch
          %157 = sbr.rel (%p155) target = $region28
        $region27: #{tpu_custom_call.1} parent=23 // pred_region
          %s158 = sand.u32 %s26, 1
          %s159 = scalar_lea.sflag [#allocation3], %s158
          %s160 = sand.u32 %s26, 1
          %s161 = smul.addr %s160, 32
          %s162 = scalar_lea.vmem [#allocation2], %s161
          %s164 = ssub.s32 512, 512
          %165 = vsyncadd %s159, %s164
          %s166 = smul.addr %s16, 4
          %s167 = smul.addr %s166, 128
          %s168 = scalar_lea.hbm %s0, %s167
          %s169 = sshll.u32 %s162, 4
          %s170 = int_to_ptr.vmem [resolvable:$true] %s169
          %175 = dma.hbm_to_vmem [thread:$0]  %s168, 512, %s170, %s159, 128, 128, 8
        $region28: #{tpu_custom_call.1} parent=23 // pred_fallthru
          _
      $region24: #{tpu_custom_call.1} parent=5 // pred_fallthru
        _
      %p176 = scmp.le.s32.totalorder 1, %s16
      %p177 = scmp.lt.s32.totalorder %s16, 3
      %p178 = pnand %p176, %p177
      %p179 = pneg %p178
      // Predicated region
      $region29: #{tpu_custom_call.1} parent=5 // pred_check
        _
      $region30: #{tpu_custom_call.1} parent=5 // pred_check_branch
        %181 = sbr.rel (%p178) target = $region32
      $region31: #{tpu_custom_call.1} parent=5 // pred_region
        %s182 = ssub.s32 %s16, 1
        %s183 = sand.u32 %s29, 1
        %s184 = scalar_lea.sflag [#allocation3], %s183
        %s185 = sand.u32 %s29, 1
        %s186 = smul.addr %s185, 32
        %s187 = scalar_lea.vmem [#allocation2], %s186
        // Predicated region
        $region33: #{tpu_custom_call.1} parent=31 // pred_check
          %p188 = pneg %p42
        $region34: #{tpu_custom_call.1} parent=31 // pred_check_branch
          %190 = sbr.rel (%p188) target = $region36
        $region35: #{tpu_custom_call.1} parent=31 // pred_region
          %191 = dma.done %s184, 512
        $region36: #{tpu_custom_call.1} parent=31 // pred_fallthru
          _
        // Predicated region
        $region37: #{tpu_custom_call.1} parent=31 // pred_check
          %p192 = pneg %p63
        $region38: #{tpu_custom_call.1} parent=31 // pred_check_branch
          %194 = sbr.rel (%p192) target = $region40
        $region39: #{tpu_custom_call.1} parent=31 // pred_region
          %195 = dma.done [#allocation6], 512
        $region40: #{tpu_custom_call.1} parent=31 // pred_fallthru
          _
        // Predicated region
        $region41: #{tpu_custom_call.1} parent=31 // pred_check
          %p196 = pneg %p84
        $region42: #{tpu_custom_call.1} parent=31 // pred_check_branch
          %198 = sbr.rel (%p196) target = $region44
        $region43: #{tpu_custom_call.1} parent=31 // pred_region
          %199 = dma.done [#allocation6], 512
        $region44: #{tpu_custom_call.1} parent=31 // pred_fallthru
          _
        %s200 = sand.u32 %s29, 1
        %s201 = scalar_lea.sflag [#allocation3], %s200
        %s202 = sand.u32 %s29, 1
        %s203 = smul.addr %s202, 32
        %s204 = scalar_lea.vmem [#allocation2], %s203
        %p205 = pneg %p42
        %p206 = pneg %p39
        %p207 = pneg %p63
        %p208 = pneg %p60
        %p209 = pneg %p84
        %p210 = pneg %p81
        %p211 = pneg %p110
        %p212 = pneg %p107
        %s213 = sand.u32 %s97, 1
        %s214 = scalar_lea.sflag [#allocation4], %s213
        %s215 = sand.u32 %s97, 1
        %s216 = smul.addr %s215, 32
        %s217 = scalar_lea.vmem [#allocation8], %s216
        %v218 = vld [vmem:[%s187] sm:$0xff]
        %v219 = vld [vmem:[%s187 + $0x8] sm:$0xff]
        %v220 = vld [vmem:[%s187 + $0x10] sm:$0xff]
        %v221 = vld [vmem:[%s187 + $0x18] sm:$0xff]
        %222 = vadd.xlane.f32.xlu0 %v218
        %v223 = vpop.xlane.xlu0 %222
        %224 = vadd.xlane.f32.xlu0 %v219
        %v225 = vpop.xlane.xlu0 %224
        %226 = vadd.xlane.f32.xlu0 %v220
        %v227 = vpop.xlane.xlu0 %226
        %228 = vadd.xlane.f32.xlu0 %v221
        %v229 = vpop.xlane.xlu0 %228
        %v230 = vmul.f32 %v218, %v218
        %v231 = vmul.f32 %v219, %v219
        %v232 = vmul.f32 %v220, %v220
        %v233 = vmul.f32 %v221, %v221
        %234 = vadd.xlane.f32.xlu0 %v230
        %v235 = vpop.xlane.xlu0 %234
        %236 = vadd.xlane.f32.xlu0 %v231
        %v237 = vpop.xlane.xlu0 %236
        %238 = vadd.xlane.f32.xlu0 %v232
        %v239 = vpop.xlane.xlu0 %238
        %240 = vadd.xlane.f32.xlu0 %v233
        %v241 = vpop.xlane.xlu0 %240
        %v242 = vmul.f32 %v223, 0.0078125
        %v243 = vmul.f32 %v225, 0.0078125
        %v244 = vmul.f32 %v227, 0.0078125
        %v245 = vmul.f32 %v229, 0.0078125
        %v246 = vmul.f32 %v235, 0.0078125
        %v247 = vmul.f32 %v237, 0.0078125
        %v248 = vmul.f32 %v239, 0.0078125
        %v249 = vmul.f32 %v241, 0.0078125
        %v250 = vmul.f32 %v242, %v242
        %v251 = vmul.f32 %v243, %v243
        %v252 = vmul.f32 %v244, %v244
        %v253 = vmul.f32 %v245, %v245
        %v254 = vsub.f32 %v246, %v250
        %v255 = vsub.f32 %v247, %v251
        %v256 = vsub.f32 %v248, %v252
        %v257 = vsub.f32 %v249, %v253
        %v258 = vadd.f32 %v254, 1e-06
        %v259 = vadd.f32 %v255, 1e-06
        %v260 = vadd.f32 %v256, 1e-06
        %v261 = vadd.f32 %v257, 1e-06
        %v262 = vrsqrt.pop %v258
        %v263 = vrsqrt.pop %v259
        %v264 = vrsqrt.pop %v260
        %v265 = vrsqrt.pop %v261
        %v266 = vmul.f32 %v218, %v262
        %v267 = vmul.f32 %v219, %v263
        %v268 = vmul.f32 %v220, %v264
        %v269 = vmul.f32 %v221, %v265
        %v270 = vmul.f32 %v242, %v262
        %v271 = vmul.f32 %v243, %v263
        %v272 = vmul.f32 %v244, %v264
        %v273 = vmul.f32 %v245, %v265
        %v274 = vsub.f32 %v266, %v270
        %v275 = vsub.f32 %v267, %v271
        %v276 = vsub.f32 %v268, %v272
        %v277 = vsub.f32 %v269, %v273
        %v278 = vld [vmem:[#allocation5] sm:$0xff]
        %v279 = vld [vmem:[#allocation5 + $0x8] sm:$0xff]
        %v280 = vld [vmem:[#allocation5 + $0x10] sm:$0xff]
        %v281 = vld [vmem:[#allocation5 + $0x18] sm:$0xff]
        %v282 = vld [vmem:[#allocation7] sm:$0xff]
        %v283 = vld [vmem:[#allocation7 + $0x8] sm:$0xff]
        %v284 = vld [vmem:[#allocation7 + $0x10] sm:$0xff]
        %v285 = vld [vmem:[#allocation7 + $0x18] sm:$0xff]
        %v286 = vmul.f32 %v274, %v278
        %v287 = vmul.f32 %v275, %v279
        %v288 = vmul.f32 %v276, %v280
        %v289 = vmul.f32 %v277, %v281
        %v290 = vadd.f32 %v286, %v282
        %v291 = vadd.f32 %v287, %v283
        %v292 = vadd.f32 %v288, %v284
        %v293 = vadd.f32 %v289, %v285
        %294 = vst [vmem:[%s217] sm:$0xff] %v290
        %295 = vst [vmem:[%s217 + $0x8] sm:$0xff] %v291
        %296 = vst [vmem:[%s217 + $0x10] sm:$0xff] %v292
        %297 = vst [vmem:[%s217 + $0x18] sm:$0xff] %v293
        %s298 = sand.u32 %s97, 1
        %s299 = scalar_lea.sflag [#allocation4], %s298
        %s300 = sand.u32 %s97, 1
        %s301 = smul.addr %s300, 32
        %s302 = scalar_lea.vmem [#allocation8], %s301
        // Predicated region
        $region45: #{tpu_custom_call.1} parent=31 // pred_check
          %p303 = pneg %p107
        $region46: #{tpu_custom_call.1} parent=31 // pred_check_branch
          %305 = sbr.rel (%p303) target = $region48
        $region47: #{tpu_custom_call.1} parent=31 // pred_region
          %s307 = ssub.s32 512, 512
          %308 = vsyncadd %s299, %s307
          %s309 = smul.addr %s21, 4
          %s310 = smul.addr %s309, 128
          %s311 = scalar_lea.hbm %s3, %s310
          %s312 = sshll.u32 %s302, 4
          %s313 = int_to_ptr.vmem [resolvable:$true] %s312
          %318 = dma.vmem_to_hbm [thread:$0]  %s313, 512, %s311, %s299, 128, 128, 8
        $region48: #{tpu_custom_call.1} parent=31 // pred_fallthru
          _
      $region32: #{tpu_custom_call.1} parent=5 // pred_fallthru
        _
      %p319 = scmp.le.s32.totalorder 2, %s16
      // Predicated region
      $region49: #{tpu_custom_call.1} parent=5 // pred_check
        %p320 = pneg %p319
      $region50: #{tpu_custom_call.1} parent=5 // pred_check_branch
        %322 = sbr.rel (%p320) target = $region52
      $region51: #{tpu_custom_call.1} parent=5 // pred_region
        %s323 = ssub.s32 %s16, 2
        // Predicated region
        $region53: #{tpu_custom_call.1} parent=51 // pred_check
          %p324 = pneg %p113
        $region54: #{tpu_custom_call.1} parent=51 // pred_check_branch
          %326 = sbr.rel (%p324) target = $region56
        $region55: #{tpu_custom_call.1} parent=51 // pred_region
          %s327 = sand.u32 %s98, 1
          %s328 = scalar_lea.sflag [#allocation4], %s327
          %s329 = sand.u32 %s98, 1
          %s330 = smul.addr %s329, 32
          %s331 = scalar_lea.vmem [#allocation8], %s330
          %332 = dma.done %s328, 512
        $region56: #{tpu_custom_call.1} parent=51 // pred_fallthru
          _
      $region52: #{tpu_custom_call.1} parent=5 // pred_fallthru
        _
    $region6: #{tpu_custom_call.1} parent=1 // loop_footer
      %s20 = sadd.s32 1, %s16
    $region7: #{tpu_custom_call.1} parent=1 // loop_footer_branch
      %15 = sbr.rel target = $region3
    $region8: #{tpu_custom_call.1} parent=1 // loop_exit
      _
    %333 = vsyncpa [#allocation3], 1
    %s334 = scalar_lea.sflag [#allocation3], 1
    %335 = vsyncpa %s334, 1
    %336 = vsyncpa [#allocation6], 1
    %337 = vsyncpa [#allocation4], 1
    %s338 = scalar_lea.sflag [#allocation4], 1
    %339 = vsyncpa %s338, 1

</llo_original>
